<compile_context>
chip_gen: v6e
topology: v6e:2x2x1
jax: 0.10.0
libtpu: 0.0.40
codegen_flags: <defaults>
</compile_context>

<pallas_src>
import jax
import jax.numpy as jnp
from jax import lax
from jax.experimental import pallas as pl
from jax.experimental.pallas import tpu as pltpu


_VMEM_LIMIT = 32 * 1024 * 1024   # safe on v5e/v6e/v7x; re-derive for production H/V


def _round_up(n, m):
    return -(-n // m) * m


def _pick_tile(n, target, align):
    """Largest multiple of `align` <= target that divides n, else full n."""
    if n <= target:
        return n
    t = (target // align) * align
    while t >= align:
        if n % t == 0:
            return t
        t -= align
    return n


def _pad_gate_cols(w, H, Hp):
    """Pad a trailing 4H gate axis to 4Hp, padding each of the i,f,g,o gate
    segments separately so kernel slices gates[:, k*Hp:(k+1)*Hp] keep
    PyTorch's gate order."""
    if Hp == H:
        return w
    lead = w.shape[:-1]
    w4 = w.reshape(lead + (4, H))
    pad = [(0, 0)] * len(lead) + [(0, 0), (0, Hp - H)]
    return jnp.pad(w4, pad).reshape(lead + (4 * Hp,))


# ---------------------------------------------------------------------------
# Kernels A & C: tiled (M, K) @ (K, N) + bias, weight-resident grid order.
# ---------------------------------------------------------------------------
def _matmul_bias_kernel(x_ref, w_ref, b_ref, o_ref):
    o_ref[...] = (jnp.dot(x_ref[...], w_ref[...],
                          preferred_element_type=jnp.float32)
                  + b_ref[...]).astype(o_ref.dtype)


def _matmul_bias(x, w, b, *, out_dtype, tm_target=256, tn_target=512):
    """Grid is (N-blocks, M-blocks): the (K, tn) weight/bias tiles are
    grid-invariant along the inner M sweep, so the large weight is streamed
    from HBM exactly once (key for the HBM-bound vocab projection)."""
    M, K = x.shape
    _, N = w.shape
    tm = _pick_tile(M, tm_target, 8)
    tn = _pick_tile(N, tn_target, 128)
    return pl.pallas_call(
        _matmul_bias_kernel,
        out_shape=jax.ShapeDtypeStruct((M, N), out_dtype),
        grid_spec=pltpu.PrefetchScalarGridSpec(
            num_scalar_prefetch=0,
            grid=(N // tn, M // tm),                 # M = inner (revisited) axis
            in_specs=[
                pl.BlockSpec((tm, K), lambda n, m: (m, 0)),
                pl.BlockSpec((K, tn), lambda n, m: (0, n)),   # invariant inner
                pl.BlockSpec((1, tn), lambda n, m: (0, n)),   # invariant inner
            ],
            out_specs=pl.BlockSpec((tm, tn), lambda n, m: (m, n)),
        ),
        compiler_params=pltpu.CompilerParams(
            dimension_semantics=("parallel", "parallel"),
            vmem_limit_bytes=_VMEM_LIMIT),
    )(x, w, b)


# ---------------------------------------------------------------------------
# Kernel B: time-blocked LSTM recurrence (time-major blocks).
# ---------------------------------------------------------------------------
def _lstm_kernel(gx_ref, whh_ref, h_out_ref, h_ref, c_ref):
    """One grid step == Tc LSTM time steps for one batch block.

    gx_ref   : (Tc, bb, 4H) f32   precomputed x_t @ W_ih + (b_ih + b_hh)
    whh_ref  : (H, 4H)      bf16  recurrent weights (grid-invariant)
    h_out_ref: (Tc, bb, H)  bf16  hidden state per step (fed to the Linear)
    h_ref    : (bb, H)      bf16  recurrent h, carried across time blocks
    c_ref    : (bb, H)      f32   recurrent c, carried across time blocks
    """
    tb = pl.program_id(1)

    @pl.when(tb == 0)
    def _():                        # fresh state at the start of each batch block
        h_ref[...] = jnp.zeros_like(h_ref)
        c_ref[...] = jnp.zeros_like(c_ref)

    w_hh = whh_ref[...]
    H = h_ref.shape[-1]
    Tc = gx_ref.shape[0]

    def step(i, carry):
        h_bf, c = carry
        # Only the recurrent (bb, H) @ (H, 4H) dot is on the serial path; the
        # x @ W_ih contribution was hoisted into kernel A.
        gates = gx_ref[i] + jnp.dot(h_bf, w_hh,
                                    preferred_element_type=jnp.float32)
        # NOTE: 3 sigmoids + 2 tanh per step go to the EUP slot; if the bundle
        # shows EUP binding for small bb, fold sigmoid into tanh form.
        i_g = jax.nn.sigmoid(gates[:, 0 * H:1 * H])
        f_g = jax.nn.sigmoid(gates[:, 1 * H:2 * H])
        g_g = jnp.tanh(gates[:, 2 * H:3 * H])
        o_g = jax.nn.sigmoid(gates[:, 3 * H:4 * H])
        c = f_g * c + i_g * g_g
        h_bf = (o_g * jnp.tanh(c)).astype(h_out_ref.dtype)   # single cast/step
        h_out_ref[i] = h_bf                                    # full (bb, H) tile
        return h_bf, c

    h_bf, c = lax.fori_loop(0, Tc, step, (h_ref[...], c_ref[...]), unroll=2)
    h_ref[...] = h_bf
    c_ref[...] = c


def _run_lstm(gx_tm, w_hh, *, bb, Tc, resident_weights):
    Tp, Bp, G4 = gx_tm.shape
    Hp = G4 // 4
    nb, nt = Bp // bb, Tp // Tc

    if resident_weights:
        # Grid-invariant weights: request single buffering to halve their VMEM
        # footprint (main v7x 64-MiB concern at production H).
        w_spec = pl.BlockSpec((Hp, G4), lambda b, t: (0, 0),
                              pipeline_mode=pl.Buffered(1))
    else:
        w_spec = pl.BlockSpec((Hp, G4), lambda b, t: (0, 0))

    return pl.pallas_call(
        _lstm_kernel,
        out_shape=jax.ShapeDtypeStruct((Tp, Bp, Hp), jnp.bfloat16),
        grid_spec=pltpu.PrefetchScalarGridSpec(
            num_scalar_prefetch=0,
            grid=(nb, nt),
            in_specs=[
                pl.BlockSpec((Tc, bb, G4), lambda b, t: (t, b, 0)),
                w_spec,
            ],
            out_specs=pl.BlockSpec((Tc, bb, Hp), lambda b, t: (t, b, 0)),
            scratch_shapes=[
                pltpu.VMEM((bb, Hp), jnp.bfloat16),   # h state
                pltpu.VMEM((bb, Hp), jnp.float32),    # c state
            ],
        ),
        compiler_params=pltpu.CompilerParams(
            # batch blocks are independent (megacore-splittable on v7x); the
            # time recurrence is sequential (scratch carry) -> "arbitrary".
            dimension_semantics=("parallel", "arbitrary"),
            vmem_limit_bytes=_VMEM_LIMIT),
    )(gx_tm, w_hh)


# ---------------------------------------------------------------------------
# Forward wrapper.
# ---------------------------------------------------------------------------
def decoder_rnn_forward(features, captions, params, *, time_block=16,
                        logits_dtype=jnp.float32):
    """features: (B, E) f32, captions: (B, S) int32. Returns (B, S, V) logits."""
    B, E = features.shape
    H = params["w_hh"].shape[0]
    V = params["w_lin"].shape[1]

    # Pad H to a lane tile (128) and batch to a sublane tile (8). Per-gate
    # padding keeps padded hidden dims exactly zero throughout the recurrence.
    Hp = _round_up(H, 128)
    Bp = _round_up(B, 8)

    embed_tbl = params["embed"].astype(jnp.bfloat16)                       # (V, E)
    w_ih = _pad_gate_cols(params["w_ih"], H, Hp).astype(jnp.bfloat16)      # (E, 4Hp)
    w_hh = jnp.pad(params["w_hh"], ((0, Hp - H), (0, 0)))
    w_hh = _pad_gate_cols(w_hh, H, Hp).astype(jnp.bfloat16)                # (Hp, 4Hp)
    b_lstm = _pad_gate_cols(params["b_lstm"], H, Hp).astype(jnp.float32)   # (1, 4Hp)
    w_lin = jnp.pad(params["w_lin"],
                    ((0, Hp - H), (0, 0))).astype(jnp.bfloat16)            # (Hp, V)
    b_lin = params["b_lin"].astype(jnp.float32)                            # (1, V)

    # ---- glue (plain JAX): embedding gather + prepend image features --------
    captions_ = captions[:, :-1]
    emb = jnp.take(embed_tbl, captions_, axis=0)                           # (B, S-1, E)
    x = jnp.concatenate(
        [features.astype(jnp.bfloat16)[:, None, :], emb], axis=1)          # (B, T, E)
    T = x.shape[1]

    Tc = T if T <= time_block else time_block        # LSTM steps per grid iter
    Tp = _round_up(T, Tc)
    x = jnp.pad(x, ((0, Bp - B), (0, Tp - T), (0, 0)))                     # (Bp, Tp, E)

    # ---- kernel A: hoisted input projection (one well-shaped matmul) --------
    gx = _matmul_bias(x.reshape(Bp * Tp, E), w_ih, b_lstm,
                      out_dtype=jnp.float32)                               # (Bp*Tp, 4Hp)
    gx_tm = gx.reshape(Bp, Tp, 4 * Hp).transpose(1, 0, 2)                  # (Tp, Bp, 4Hp)

    # ---- kernel B: time-blocked recurrence ----------------------------------
    bb = Bp // 2 if Bp >= 16 else Bp                 # >=2 batch blocks -> v7x TCs
    assert Bp % bb == 0 and Tp % Tc == 0, (Bp, bb, Tp, Tc)

    resident = hasattr(pl, "Buffered")
    try:
        h_seq = _run_lstm(gx_tm, w_hh, bb=bb, Tc=Tc, resident_weights=resident)
    except Exception:
        # pl.Buffered(1) unsupported on this jax/libtpu combo: fall back to the
        # default (double-buffered but DMA'd-once) weight BlockSpec.
        h_seq = _run_lstm(gx_tm, w_hh, bb=bb, Tc=Tc, resident_weights=False)

    # ---- kernel C: hoisted vocab projection (weight read from HBM once) -----
    # TODO(synk): on v5e pass logits_dtype=jnp.bfloat16 to halve the dominant
    # HBM logits write if the downstream softmax/loss tolerates it.
    h2 = h_seq.transpose(1, 0, 2).reshape(Bp * Tp, Hp)                     # (M, Hp)
    logits = _matmul_bias(h2, w_lin, b_lin, out_dtype=logits_dtype)        # (M, V)

    return logits.reshape(Bp, Tp, V)[:B, :T, :]                            # drop padding


# ---------------------------------------------------------------------------
# Pure-JAX reference (same mixed precision; PyTorch gate order i, f, g, o).
# ---------------------------------------------------------------------------
def decoder_rnn_reference(features, captions, params):
    embed_tbl = params["embed"].astype(jnp.bfloat16)
    w_ih = params["w_ih"].astype(jnp.bfloat16)
    w_hh = params["w_hh"].astype(jnp.bfloat16)
    b = params["b_lstm"].astype(jnp.float32)
    w_lin = params["w_lin"].astype(jnp.bfloat16)
    b_lin = params["b_lin"].astype(jnp.float32)
    B = features.shape[0]
    H = w_hh.shape[0]

    captions_ = captions[:, :-1]
    emb = jnp.take(embed_tbl, captions_, axis=0)
    x = jnp.concatenate(
        [features.astype(jnp.bfloat16)[:, None, :], emb], axis=1)   # (B, T, E)
    x_tm = jnp.transpose(x, (1, 0, 2))                               # (T, B, E)

    def step(carry, x_t):
        h, c = carry
        gates = (jnp.dot(x_t, w_ih, preferred_element_type=jnp.float32)
                 + jnp.dot(h.astype(jnp.bfloat16), w_hh,
                           preferred_element_type=jnp.float32)
                 + b)
        i_g, f_g, g_g, o_g = jnp.split(gates, 4, axis=-1)
        c = jax.nn.sigmoid(f_g) * c + jax.nn.sigmoid(i_g) * jnp.tanh(g_g)
        h = jax.nn.sigmoid(o_g) * jnp.tanh(c)
        return (h, c), h.astype(jnp.bfloat16)

    init = (jnp.zeros((B, H), jnp.float32), jnp.zeros((B, H), jnp.float32))
    _, outs = lax.scan(step, init, x_tm)                             # (T, B, H)
    outs = jnp.transpose(outs, (1, 0, 2))                            # (B, T, H)
    return jnp.dot(outs, w_lin, preferred_element_type=jnp.float32) + b_lin


def init_params(key, embed_size, hidden_size, vocab_size):
    ks = jax.random.split(key, 7)
    s_lstm = 1.0 / jnp.sqrt(hidden_size)
    s_lin = 1.0 / jnp.sqrt(hidden_size)

    def u(k, shape, scale):
        return jax.random.uniform(k, shape, jnp.float32, -scale, scale)

    b_ih = u(ks[4], (1, 4 * hidden_size), s_lstm)
    b_hh = u(ks[5], (1, 4 * hidden_size), s_lstm)
    return {
        "embed": jax.random.normal(ks[0], (vocab_size, embed_size), jnp.float32),
        "w_ih": u(ks[1], (embed_size, 4 * hidden_size), s_lstm),
        "w_hh": u(ks[2], (hidden_size, 4 * hidden_size), s_lstm),
        "b_lstm": b_ih + b_hh,
        "w_lin": u(ks[3], (hidden_size, vocab_size), s_lin),
        "b_lin": u(ks[6], (1, vocab_size), s_lin),
    }
    # TODO(synk): the autoregressive `sample()` method (host-side greedy decode
    # loop with .item()) is not kernelized; only forward() is implemented.


if __name__ == "__main__":
    embed_size, hidden_size, vocab_size = 32, 32, 128
    batch, seq_len = 2, 8   # captions length 8 -> LSTM sequence length T = 8

    key = jax.random.PRNGKey(0)
    k_p, k_f, k_c = jax.random.split(key, 3)

    params = init_params(k_p, embed_size, hidden_size, vocab_size)
    features = jax.random.normal(k_f, (batch, embed_size), jnp.float32)
    captions = jax.random.randint(k_c, (batch, seq_len), 0, vocab_size, jnp.int32)

    out = decoder_rnn_forward(features, captions, params)
    out = jax.block_until_ready(out)

    ref = decoder_rnn_reference(features, captions, params)
    assert out.shape == (batch, seq_len, vocab_size), out.shape
    assert jnp.allclose(out, ref, atol=1e-2, rtol=1e-2), float(
        jnp.max(jnp.abs(out - ref)))

    print("KERNEL_OK")
</pallas_src>

<mosaic_0001>
module attributes {stable_mosaic.version = 11 : i64} {
  func.func @_matmul_bias_kernel(%arg0: i32, %arg1: i32, %arg2: memref<64x32xbf16, #tpu.memory_space<vmem>>, %arg3: memref<32x512xbf16, #tpu.memory_space<vmem>>, %arg4: memref<1x512xf32, #tpu.memory_space<vmem>>, %arg5: memref<64x512xf32, #tpu.memory_space<vmem>>) attributes {dimension_semantics = [#tpu.dimension_semantics<parallel>, #tpu.dimension_semantics<parallel>], iteration_bounds = array<i64: 1, 1>, scalar_prefetch = 0 : i64, scratch_operands = 0 : i64, tpu.core_type = #tpu.core_type<tc>, window_params = [{transform_indices = @transform_0, window_bounds = array<i64: 64, 32>}, {transform_indices = @transform_1, window_bounds = array<i64: 32, 512>}, {transform_indices = @transform_2, window_bounds = array<i64: 1, 512>}, {transform_indices = @transform_3, window_bounds = array<i64: 64, 512>}]} {
    %c0 = arith.constant 0 : index
    %c0_0 = arith.constant 0 : index
    %0 = vector.load %arg2[%c0, %c0_0] : memref<64x32xbf16, #tpu.memory_space<vmem>>, vector<64x32xbf16>
    %c0_1 = arith.constant 0 : index
    %c0_2 = arith.constant 0 : index
    %1 = vector.load %arg3[%c0_1, %c0_2] : memref<32x512xbf16, #tpu.memory_space<vmem>>, vector<32x512xbf16>
    %cst = arith.constant dense<0.000000e+00> : vector<64x512xf32>
    %2 = tpu.matmul %0, %1, %cst {dimension_numbers = #tpu.dot_dimension_numbers<[1], [0], [0], [1], [0, 0, 1, 1], [], []>} : vector<64x32xbf16>, vector<32x512xbf16>, vector<64x512xf32> -> vector<64x512xf32>
    %c0_3 = arith.constant 0 : index
    %c0_4 = arith.constant 0 : index
    %3 = vector.load %arg4[%c0_3, %c0_4] : memref<1x512xf32, #tpu.memory_space<vmem>>, vector<1x512xf32>
    %4 = vector.broadcast %3 : vector<1x512xf32> to vector<64x512xf32>
    %5 = arith.addf %2, %4 : vector<64x512xf32>
    %c0_5 = arith.constant 0 : index
    %c0_6 = arith.constant 0 : index
    %6 = vector.load %arg5[%c0_5, %c0_6] : memref<64x512xf32, #tpu.memory_space<vmem>>, vector<64x512xf32>
    tpu.vector_store %arg5[%c0_5, %c0_6], %5 {strides = array<i32>} : memref<64x512xf32, #tpu.memory_space<vmem>>, vector<64x512xf32>,
    return
  }
  func.func @transform_0(%arg0: i32, %arg1: i32) -> (i32, i32) {
    %c0_i32 = arith.constant 0 : i32
    %c0_i32_0 = arith.constant 0 : i32
    return %arg1, %c0_i32 : i32, i32
  }
  func.func @transform_1(%arg0: i32, %arg1: i32) -> (i32, i32) {
    %c0_i32 = arith.constant 0 : i32
    %c0_i32_0 = arith.constant 0 : i32
    return %c0_i32, %arg0 : i32, i32
  }
  func.func @transform_2(%arg0: i32, %arg1: i32) -> (i32, i32) {
    %c0_i32 = arith.constant 0 : i32
    %c0_i32_0 = arith.constant 0 : i32
    return %c0_i32, %arg0 : i32, i32
  }
  func.func @transform_3(%arg0: i32, %arg1: i32) -> (i32, i32) {
    %c0_i32 = arith.constant 0 : i32
    return %arg1, %arg0 : i32, i32
  }
}

</mosaic_0001>

<llo_original>
// kernel: tpu_custom_call.1
$region0: #{tpu_custom_call.1}
  #allocation0 [shape = 'u32[]', space=smem, size = 0x4, offset = 0x4, fixed_abs, tag = 'smem constant byte address 0x4 - core index']
  #allocation1 [shape = 'u32[144,128]{1,0:T(1,128)}', space=vmem, size = 0x12000, scoped, tag = 'internal scratch']
  %s0 = inlined_call_operand.vmem [shape: bf16[64,32], index: 0, kind: input, shape index: {}]
  %s1 = inlined_call_operand.hbm [shape: bf16[32,512], index: 1, kind: input, shape index: {}]
  %s2 = inlined_call_operand.vmem [shape: f32[1,512], index: 2, kind: input, shape index: {}]
  %s3 = inlined_call_operand.hbm [shape: f32[64,512], index: 3, kind: output, shape index: {}]
  %s4 = sld [smem:[#allocation0]]
  $region26: #{tpu_custom_call.1} parent=0
    _
  %s6 = ssub.s32 1, %s4
  %s7 = scalar_select 0, %s6, %s4
  $region1: #{tpu_custom_call.1} parent=0
    #allocation2 [shape = 'u8[32768]{0}', space=vmem, size = 0x8000, scoped, tag = 'input window, operand 1, single buffered']
    #allocation3 [shape = 's32[1]{0}', space=sflag, size = 0x4, scoped, tag = 'scoped memory for tpu_custom_call.1']
    #allocation4 [shape = 's32[1]{0}', space=sflag, size = 0x4, scoped, tag = 'scoped memory for tpu_custom_call.1']
    #allocation5 [shape = 'u8[131072]{0}', space=vmem, size = 0x20000, scoped, tag = 'output window, operand 0, single buffered']
    %8 = vsyncpa [#allocation3], 0
    %9 = vsyncpa [#allocation4], 0
    // Predicated region
    $region2: #{tpu_custom_call.1} parent=1 // pred_check
      _
    $region3: #{tpu_custom_call.1} parent=1 // pred_check_branch
      %11 = sbr.rel (0) target = $region5
    $region4: #{tpu_custom_call.1} parent=1 // pred_region
      _
    $region5: #{tpu_custom_call.1} parent=1 // pred_fallthru
      _
    // Predicated region
    $region6: #{tpu_custom_call.1} parent=1 // pred_check
      _
    $region7: #{tpu_custom_call.1} parent=1 // pred_check_branch
      %13 = sbr.rel (0) target = $region9
    $region8: #{tpu_custom_call.1} parent=1 // pred_region
      %s15 = ssub.s32 1024, 1024
      %16 = vsyncadd [#allocation3], %s15
      %s17 = sshll.u32 [#allocation2], 4
      %s18 = int_to_ptr.vmem [resolvable:$true] %s17
      %23 = dma.hbm_to_vmem [thread:$0]  %s1, 1024, %s18, [#allocation3], 256, 256, 16
    $region9: #{tpu_custom_call.1} parent=1 // pred_fallthru
      _
    // Predicated region
    $region10: #{tpu_custom_call.1} parent=1 // pred_check
      _
    $region11: #{tpu_custom_call.1} parent=1 // pred_check_branch
      %25 = sbr.rel (0) target = $region13
    $region12: #{tpu_custom_call.1} parent=1 // pred_region
      _
    $region13: #{tpu_custom_call.1} parent=1 // pred_fallthru
      _
    // Predicated region
    $region14: #{tpu_custom_call.1} parent=1 // pred_check
      _
    $region15: #{tpu_custom_call.1} parent=1 // pred_check_branch
      %27 = sbr.rel (0) target = $region17
    $region16: #{tpu_custom_call.1} parent=1 // pred_region
      %28 = dma.done [#allocation3], 1024
    $region17: #{tpu_custom_call.1} parent=1 // pred_fallthru
      _
    %v30 = vld [vmem:[%s0] sm:$0xf]
    %v31 = vld [vmem:[%s0 + $0x4] sm:$0xf]
    %v32 = vld [vmem:[%s0 + $0x8] sm:$0xf]
    %v33 = vld [vmem:[%s0 + $0xc] sm:$0xf]
    %v34 = vld [vmem:[%s0 + $0x10] sm:$0xf]
    %v35 = vld [vmem:[%s0 + $0x14] sm:$0xf]
    %v36 = vld [vmem:[%s0 + $0x18] sm:$0xf]
    %v37 = vld [vmem:[%s0 + $0x1c] sm:$0xf]
    %v38 = vld [vmem:[#allocation2] sm:$0xff]
    %v39 = vld [vmem:[#allocation2 + $0x8] sm:$0xff]
    %v40 = vld [vmem:[#allocation2 + $0x10] sm:$0xff]
    %v41 = vld [vmem:[#allocation2 + $0x18] sm:$0xff]
    %v42 = vld [vmem:[#allocation2 + $0x20] sm:$0xff]
    %v43 = vld [vmem:[#allocation2 + $0x28] sm:$0xff]
    %v44 = vld [vmem:[#allocation2 + $0x30] sm:$0xff]
    %v45 = vld [vmem:[#allocation2 + $0x38] sm:$0xff]
    %v46 = vld [vmem:[%s2] sm:$0xf]
    %v48 = vlaneseq
    %v49 = vshrl.u32 %v48, 7
    %v50 = vsub.s32 0, %v49
    %v51 = vrot.slane %v46, %v50
    %v52 = vlaneseq
    %v53 = vshrl.u32 %v52, 7
    %v54 = vsub.s32 1, %v53
    %v55 = vrot.slane %v46, %v54
    %v56 = vlaneseq
    %v57 = vshrl.u32 %v56, 7
    %v58 = vsub.s32 2, %v57
    %v59 = vrot.slane %v46, %v58
    %v60 = vlaneseq
    %v61 = vshrl.u32 %v60, 7
    %v62 = vsub.s32 3, %v61
    %v63 = vrot.slane %v46, %v62
    %v76 = vunpack.c.l.b16 %v30
    %v77 = vunpack.c.l.b16 %v31
    %v78 = vunpack.c.l.b16 %v32
    %v79 = vunpack.c.l.b16 %v33
    %v80 = vunpack.c.l.b16 %v34
    %v81 = vunpack.c.l.b16 %v35
    %v82 = vunpack.c.l.b16 %v36
    %v83 = vunpack.c.l.b16 %v37
    %v84 = vpack.c.b16 %v77, %v76
    %v85 = vpack.c.b16 %v79, %v78
    %v86 = vpack.c.b16 %v81, %v80
    %v87 = vpack.c.b16 %v83, %v82
    %v96 = vunpack.c.l.b16 %v38
    %v97 = vunpack.c.h.b16 %v38
    %v98 = vunpack.c.l.b16 %v39
    %v99 = vunpack.c.h.b16 %v39
    %v100 = vunpack.c.l.b16 %v40
    %v101 = vunpack.c.h.b16 %v40
    %v102 = vunpack.c.l.b16 %v41
    %v103 = vunpack.c.h.b16 %v41
    %v104 = vunpack.c.l.b16 %v42
    %v105 = vunpack.c.h.b16 %v42
    %v106 = vunpack.c.l.b16 %v43
    %v107 = vunpack.c.h.b16 %v43
    %v108 = vunpack.c.l.b16 %v44
    %v109 = vunpack.c.h.b16 %v44
    %v110 = vunpack.c.l.b16 %v45
    %v111 = vunpack.c.h.b16 %v45
    %v112 = vpack.c.b16 %v100, %v96
    %v113 = vpack.c.b16 %v101, %v97
    %v114 = vpack.c.b16 %v102, %v98
    %v115 = vpack.c.b16 %v103, %v99
    %v116 = vpack.c.b16 %v108, %v104
    %v117 = vpack.c.b16 %v109, %v105
    %v118 = vpack.c.b16 %v110, %v106
    %v119 = vpack.c.b16 %v111, %v107
    %vm128 = vcmask 261120
    %v130 = vsel %vm128, %v84, 0
    %v133 = vsel %vm128, %v85, 0
    %v136 = vsel %vm128, %v86, 0
    %v139 = vsel %vm128, %v87, 0
    %141 = vmatprep.subr.bf16.mxu0 0
    %142 = vmatpush1.bf16.msra.mxu0 0
    %143 = vmatprep.subr.bf16.mxu0 0
    %144 = vmatpush1.bf16.msra.mxu0 0
    %145 = vmatprep.subr.bf16.mxu0 0
    %146 = vmatpush1.bf16.msra.mxu0 0
    %147 = vmatprep.subr.bf16.mxu0 0
    %148 = vmatpush1.bf16.msra.mxu0 0
    %149 = vmatprep.subr.bf16.mxu0 0
    %150 = vmatpush1.bf16.msra.mxu0 0
    %151 = vmatprep.subr.bf16.mxu0 0
    %152 = vmatpush1.bf16.msra.mxu0 0
    %153 = vmatprep.subr.bf16.mxu0 %v117
    %154 = vmatpush1.bf16.msra.mxu0 %v116
    %155 = vmatprep.subr.bf16.mxu0 %v113
    %156 = vmatpush1.bf16.msra.mxu0 %v112
    %157 = vmatprep.subr.bf16.mxu0 0
    %158 = vmatpush2.bf16.msra.mxu0 0
    %159 = vmatprep.subr.bf16.mxu0 0
    %160 = vmatpush2.bf16.msra.mxu0 0
    %161 = vmatprep.subr.bf16.mxu0 0
    %162 = vmatpush2.bf16.msra.mxu0 0
    %163 = vmatprep.subr.bf16.mxu0 0
    %164 = vmatpush2.bf16.msra.mxu0 0
    %165 = vmatprep.subr.bf16.mxu0 0
    %166 = vmatpush2.bf16.msra.mxu0 0
    %167 = vmatprep.subr.bf16.mxu0 0
    %168 = vmatpush2.bf16.msra.mxu0 0
    %169 = vmatprep.subr.bf16.mxu0 0
    %170 = vmatpush2.bf16.msra.mxu0 0
    %171 = vmatprep.subr.bf16.mxu0 0
    %172 = vmatpush2.bf16.msra.mxu0 0
    %173 = vmatprep.mubr.bf16.mxu0 0
    %174 = vmatmul.mubr.bf16.gmra.mxu0 %v130
    %v175 = vpop.f32.mrf.mxu0
    %v176 = vadd.f32 %v51, %v175
    %v177 = vpop.f32.mrf.mxu0
    %v178 = vadd.f32 %v55, %v177
    %v179 = vpop.f32.mrf.mxu0
    %v180 = vadd.f32 %v51, %v179
    %v181 = vpop.f32.mrf.mxu0
    %v182 = vadd.f32 %v55, %v181
    %183 = vmatprep.mubr.bf16.mxu0 0
    %184 = vmatmul.mubr.bf16.gmra.mxu0 %v133
    %v185 = vpop.f32.mrf.mxu0
    %v186 = vadd.f32 %v51, %v185
    %v187 = vpop.f32.mrf.mxu0
    %v188 = vadd.f32 %v55, %v187
    %v189 = vpop.f32.mrf.mxu0
    %v190 = vadd.f32 %v51, %v189
    %v191 = vpop.f32.mrf.mxu0
    %v192 = vadd.f32 %v55, %v191
    %193 = vmatprep.mubr.bf16.mxu0 0
    %194 = vmatmul.mubr.bf16.gmra.mxu0 %v136
    %v195 = vpop.f32.mrf.mxu0
    %v196 = vadd.f32 %v51, %v195
    %v197 = vpop.f32.mrf.mxu0
    %v198 = vadd.f32 %v55, %v197
    %v199 = vpop.f32.mrf.mxu0
    %v200 = vadd.f32 %v51, %v199
    %v201 = vpop.f32.mrf.mxu0
    %v202 = vadd.f32 %v55, %v201
    %203 = vmatprep.mubr.bf16.mxu0 0
    %204 = vmatmul.mubr.bf16.gmra.mxu0 %v139
    %v205 = vpop.f32.mrf.mxu0
    %v206 = vadd.f32 %v51, %v205
    %v207 = vpop.f32.mrf.mxu0
    %v208 = vadd.f32 %v55, %v207
    %v209 = vpop.f32.mrf.mxu0
    %v210 = vadd.f32 %v51, %v209
    %v211 = vpop.f32.mrf.mxu0
    %v212 = vadd.f32 %v55, %v211
    %213 = vdwg.mxu0
    %214 = vmatprep.subr.bf16.mxu0 0
    %215 = vmatpush1.bf16.msra.mxu0 0
    %216 = vmatprep.subr.bf16.mxu0 0
    %217 = vmatpush1.bf16.msra.mxu0 0
    %218 = vmatprep.subr.bf16.mxu0 0
    %219 = vmatpush1.bf16.msra.mxu0 0
    %220 = vmatprep.subr.bf16.mxu0 0
    %221 = vmatpush1.bf16.msra.mxu0 0
    %222 = vmatprep.subr.bf16.mxu0 0
    %223 = vmatpush1.bf16.msra.mxu0 0
    %224 = vmatprep.subr.bf16.mxu0 0
    %225 = vmatpush1.bf16.msra.mxu0 0
    %226 = vmatprep.subr.bf16.mxu0 %v119
    %227 = vmatpush1.bf16.msra.mxu0 %v118
    %228 = vmatprep.subr.bf16.mxu0 %v115
    %229 = vmatpush1.bf16.msra.mxu0 %v114
    %230 = vmatprep.subr.bf16.mxu0 0
    %231 = vmatpush2.bf16.msra.mxu0 0
    %232 = vmatprep.subr.bf16.mxu0 0
    %233 = vmatpush2.bf16.msra.mxu0 0
    %234 = vmatprep.subr.bf16.mxu0 0
    %235 = vmatpush2.bf16.msra.mxu0 0
    %236 = vmatprep.subr.bf16.mxu0 0
    %237 = vmatpush2.bf16.msra.mxu0 0
    %238 = vmatprep.subr.bf16.mxu0 0
    %239 = vmatpush2.bf16.msra.mxu0 0
    %240 = vmatprep.subr.bf16.mxu0 0
    %241 = vmatpush2.bf16.msra.mxu0 0
    %242 = vmatprep.subr.bf16.mxu0 0
    %243 = vmatpush2.bf16.msra.mxu0 0
    %244 = vmatprep.subr.bf16.mxu0 0
    %245 = vmatpush2.bf16.msra.mxu0 0
    %246 = vmatprep.mubr.bf16.mxu0 0
    %247 = vmatmul.mubr.bf16.gmra.mxu0 %v130
    %v248 = vpop.f32.mrf.mxu0
    %v249 = vadd.f32 %v59, %v248
    %v250 = vpop.f32.mrf.mxu0
    %v251 = vadd.f32 %v63, %v250
    %v252 = vpop.f32.mrf.mxu0
    %v253 = vadd.f32 %v59, %v252
    %v254 = vpop.f32.mrf.mxu0
    %v255 = vadd.f32 %v63, %v254
    %256 = vmatprep.mubr.bf16.mxu0 0
    %257 = vmatmul.mubr.bf16.gmra.mxu0 %v133
    %v258 = vpop.f32.mrf.mxu0
    %v259 = vadd.f32 %v59, %v258
    %v260 = vpop.f32.mrf.mxu0
    %v261 = vadd.f32 %v63, %v260
    %v262 = vpop.f32.mrf.mxu0
    %v263 = vadd.f32 %v59, %v262
    %v264 = vpop.f32.mrf.mxu0
    %v265 = vadd.f32 %v63, %v264
    %266 = vmatprep.mubr.bf16.mxu0 0
    %267 = vmatmul.mubr.bf16.gmra.mxu0 %v136
    %v268 = vpop.f32.mrf.mxu0
    %v269 = vadd.f32 %v59, %v268
    %v270 = vpop.f32.mrf.mxu0
    %v271 = vadd.f32 %v63, %v270
    %v272 = vpop.f32.mrf.mxu0
    %v273 = vadd.f32 %v59, %v272
    %v274 = vpop.f32.mrf.mxu0
    %v275 = vadd.f32 %v63, %v274
    %276 = vmatprep.mubr.bf16.mxu0 0
    %277 = vmatmul.mubr.bf16.gmra.mxu0 %v139
    %v278 = vpop.f32.mrf.mxu0
    %v279 = vadd.f32 %v59, %v278
    %v280 = vpop.f32.mrf.mxu0
    %v281 = vadd.f32 %v63, %v280
    %v282 = vpop.f32.mrf.mxu0
    %v283 = vadd.f32 %v59, %v282
    %v284 = vpop.f32.mrf.mxu0
    %v285 = vadd.f32 %v63, %v284
    %286 = vdwg.mxu0
    %287 = vst [vmem:[#allocation5] sm:$0xff] %v176
    %288 = vst [vmem:[#allocation5 + $0x8] sm:$0xff] %v178
    %289 = vst [vmem:[#allocation5 + $0x10] sm:$0xff] %v249
    %290 = vst [vmem:[#allocation5 + $0x18] sm:$0xff] %v251
    %291 = vst [vmem:[#allocation5 + $0x20] sm:$0xff] %v180
    %292 = vst [vmem:[#allocation5 + $0x28] sm:$0xff] %v182
    %293 = vst [vmem:[#allocation5 + $0x30] sm:$0xff] %v253
    %294 = vst [vmem:[#allocation5 + $0x38] sm:$0xff] %v255
    %295 = vst [vmem:[#allocation5 + $0x40] sm:$0xff] %v186
    %296 = vst [vmem:[#allocation5 + $0x48] sm:$0xff] %v188
    %297 = vst [vmem:[#allocation5 + $0x50] sm:$0xff] %v259
    %298 = vst [vmem:[#allocation5 + $0x58] sm:$0xff] %v261
    %299 = vst [vmem:[#allocation5 + $0x60] sm:$0xff] %v190
    %300 = vst [vmem:[#allocation5 + $0x68] sm:$0xff] %v192
    %301 = vst [vmem:[#allocation5 + $0x70] sm:$0xff] %v263
    %302 = vst [vmem:[#allocation5 + $0x78] sm:$0xff] %v265
    %303 = vst [vmem:[#allocation5 + $0x80] sm:$0xff] %v196
    %304 = vst [vmem:[#allocation5 + $0x88] sm:$0xff] %v198
    %305 = vst [vmem:[#allocation5 + $0x90] sm:$0xff] %v269
    %306 = vst [vmem:[#allocation5 + $0x98] sm:$0xff] %v271
    %307 = vst [vmem:[#allocation5 + $0xa0] sm:$0xff] %v200
    %308 = vst [vmem:[#allocation5 + $0xa8] sm:$0xff] %v202
    %309 = vst [vmem:[#allocation5 + $0xb0] sm:$0xff] %v273
    %310 = vst [vmem:[#allocation5 + $0xb8] sm:$0xff] %v275
    %311 = vst [vmem:[#allocation5 + $0xc0] sm:$0xff] %v206
    %312 = vst [vmem:[#allocation5 + $0xc8] sm:$0xff] %v208
    %313 = vst [vmem:[#allocation5 + $0xd0] sm:$0xff] %v279
    %314 = vst [vmem:[#allocation5 + $0xd8] sm:$0xff] %v281
    %315 = vst [vmem:[#allocation5 + $0xe0] sm:$0xff] %v210
    %316 = vst [vmem:[#allocation5 + $0xe8] sm:$0xff] %v212
    %317 = vst [vmem:[#allocation5 + $0xf0] sm:$0xff] %v283
    %318 = vst [vmem:[#allocation5 + $0xf8] sm:$0xff] %v285
    // Predicated region
    $region18: #{tpu_custom_call.1} parent=1 // pred_check
      _
    $region19: #{tpu_custom_call.1} parent=1 // pred_check_branch
      %320 = sbr.rel (0) target = $region21
    $region20: #{tpu_custom_call.1} parent=1 // pred_region
      %s322 = ssub.s32 4096, 4096
      %323 = vsyncadd [#allocation4], %s322
      %s324 = sshll.u32 [#allocation5], 4
      %s325 = int_to_ptr.vmem [resolvable:$true] %s324
      %330 = dma.vmem_to_hbm [thread:$0]  %s325, 4096, %s3, [#allocation4], 512, 512, 32
    $region21: #{tpu_custom_call.1} parent=1 // pred_fallthru
      _
    // Predicated region
    $region22: #{tpu_custom_call.1} parent=1 // pred_check
      _
    $region23: #{tpu_custom_call.1} parent=1 // pred_check_branch
      %332 = sbr.rel (0) target = $region25
    $region24: #{tpu_custom_call.1} parent=1 // pred_region
      %333 = dma.done [#allocation4], 4096
    $region25: #{tpu_custom_call.1} parent=1 // pred_fallthru
      _
    %334 = vsyncpa [#allocation3], 1
    %335 = vsyncpa [#allocation4], 1

</llo_original>
